<compile_context>
chip_gen: v5e
topology: v5e:2x2
jax: 0.10.0
libtpu: 0.0.40
codegen_flags: <defaults>
</compile_context>

<pallas_src>
import functools

import jax
import jax.numpy as jnp
from jax import lax
from jax.experimental import pallas as pl
from jax.experimental.pallas import tpu as pltpu


_LANE = 128
_SUB = 8
_VMEM_BUDGET_BYTES = 48 * 1024 * 1024   # stay well inside v7x's 64 MiB physical VMEM


def _round_up(n, m):
    return (n + m - 1) // m * m


def _padded_tile_bytes(rows, cols, bytes_per_elem):
    # VMEM footprint of a (rows, cols) tile after (8, 128) layout padding.
    return _round_up(max(rows, 1), _SUB) * _round_up(max(cols, 1), _LANE) * bytes_per_elem


def _vmem_need_bytes(block_b, S, H1, H2, x_bytes, x_transposed):
    x_tile = (_padded_tile_bytes(S, block_b, x_bytes) if x_transposed
              else _padded_tile_bytes(block_b, S, x_bytes))
    out_tile = _padded_tile_bytes(1, block_b, 4)
    inter = (_padded_tile_bytes(H1, block_b, 4)       # h1 f32
             + _padded_tile_bytes(H1, block_b, 2)     # h1 bf16 copy
             + _padded_tile_bytes(H2, block_b, 4))    # h2 f32
    weights = (_padded_tile_bytes(H1, S, 2) + _padded_tile_bytes(H2, H1, 2)
               + _padded_tile_bytes(H1, 1, 4) + _padded_tile_bytes(H2, 1, 4)
               + _padded_tile_bytes(H2, 1, 4) + _padded_tile_bytes(1, 1, 4))
    # streamed x and output are double-buffered by the Pallas pipeline
    return 2 * x_tile + 2 * out_tile + inter + weights


def _mlp_kernel(x_ref, w1_ref, b1_ref, w2_ref, b2_ref, w3_ref, b3_ref, o_ref,
                *, x_transposed):
    # Cast the streamed x tile to bf16 in-kernel (VPU work hidden under the DMA);
    # x is read from HBM exactly once, in the producer's dtype.
    x_bf = x_ref[...].astype(jnp.bfloat16)

    if x_transposed:
        # x tile (S, block_b): canonical (H1,S)@(S,block_b) MXU form, lane-dense,
        # no per-step relayout.
        h1 = jnp.dot(w1_ref[...], x_bf, preferred_element_type=jnp.float32)
    else:
        # x tile (block_b, S): contract both operands on their feature dim so the
        # batch lands on the 128-lane axis for the whole kernel.
        h1 = lax.dot_general(w1_ref[...], x_bf, (((1,), (1,)), ((), ())),
                             preferred_element_type=jnp.float32)
    h1 = jnp.maximum(h1 + b1_ref[...], 0.0)                     # (H1, block_b) f32

    # Second Linear in bf16 (native MXU path; halves passes on v5e), f32 accumulate.
    h2 = jnp.dot(w2_ref[...], h1.astype(jnp.bfloat16),
                 preferred_element_type=jnp.float32)            # (H2, block_b) f32
    h2 = jnp.maximum(h2 + b2_ref[...], 0.0)

    # Final Linear(H2 -> 1): VPU broadcast-multiply + sublane reduce (no N=1 MXU
    # pass).  Result is a dense [1, block_b] lane row -> unmasked vst stores.
    out = jnp.sum(h2 * w3_ref[...], axis=0, keepdims=True) + b3_ref[...]
    o_ref[...] = out.astype(o_ref.dtype)


@functools.partial(jax.jit,
                   static_argnames=("block_b", "x_transposed", "vmem_limit_bytes"))
def _probe_pallas(x, w1, b1, w2, b2, w3, b3, *, block_b, x_transposed,
                  vmem_limit_bytes):
    if x_transposed:
        S, Bp = x.shape
    else:
        Bp, S = x.shape
    H1 = w1.shape[0]
    H2 = w2.shape[0]
    # Ragged last tile (when block_b does not divide Bp) is handled by Pallas'
    # masked boundary blocks; padded columns are sliced off by the wrapper.
    grid = (pl.cdiv(Bp, block_b),)

    if x_transposed:
        x_spec = pl.BlockSpec((S, block_b), lambda i: (0, i))
    else:
        x_spec = pl.BlockSpec((block_b, S), lambda i: (i, 0))

    flops = 2 * Bp * (S * H1 + H1 * H2 + H2)
    bytes_accessed = (x.size * x.dtype.itemsize + Bp * 4
                      + sum(a.size * a.dtype.itemsize
                            for a in (w1, b1, w2, b2, w3, b3)))

    kernel = functools.partial(_mlp_kernel, x_transposed=x_transposed)
    return pl.pallas_call(
        kernel,
        out_shape=jax.ShapeDtypeStruct((1, Bp), jnp.float32),
        grid_spec=pltpu.PrefetchScalarGridSpec(
            num_scalar_prefetch=0,
            grid=grid,
            in_specs=[
                x_spec,                                      # streamed batch tile
                pl.BlockSpec((H1, S), lambda i: (0, 0)),     # w1 (resident, bf16)
                pl.BlockSpec((H1, 1), lambda i: (0, 0)),     # b1 column (f32)
                pl.BlockSpec((H2, H1), lambda i: (0, 0)),    # w2 (resident, bf16)
                pl.BlockSpec((H2, 1), lambda i: (0, 0)),     # b2 column (f32)
                pl.BlockSpec((H2, 1), lambda i: (0, 0)),     # w3 column (f32)
                pl.BlockSpec((1, 1), lambda i: (0, 0)),      # b3 scalar (f32)
            ],
            # lane-dense output: each grid step writes one [1, block_b] lane window
            out_specs=pl.BlockSpec((1, block_b), lambda i: (0, i)),
        ),
        compiler_params=pltpu.CompilerParams(
            # batch tiles are independent -> megacore sharding on v7x.
            # (If profiling shows one TC idle, try pltpu.CORE_PARALLEL here.)
            dimension_semantics=("parallel",),
            vmem_limit_bytes=vmem_limit_bytes,
        ),
        cost_estimate=pl.CostEstimate(flops=flops, transcendentals=0,
                                      bytes_accessed=bytes_accessed),
    )(x, w1, b1, w2, b2, w3, b3)


def non_linear_probe(x, w1, b1, w2, b2, w3, b3, *, block_b=None, use_pallas=None,
                     x_transposed=False):
    """Forward pass of nonLinearProbe.

    x: [B, num_sensors] (or [S, B] if x_transposed=True — lane-dense streaming
       layout if the producer can emit it for free), any float dtype.
    w1: [H1, S], b1: [H1], w2: [H2, H1], b2: [H2], w3: [1, H2], b3: [1]
    (PyTorch nn.Linear layout).  Returns [B, 1] float32.
    """
    if x_transposed:
        S, B = x.shape
    else:
        B, S = x.shape
    H1 = w1.shape[0]
    H2 = w2.shape[0]

    if use_pallas is None:
        # Tiny batches: a 1-step pallas_call plus padding plumbing cannot beat a
        # single fused XLA kernel; only dispatch to Pallas for non-trivial work.
        use_pallas = B >= 1024
    if not use_pallas:
        xf = (x.T if x_transposed else x).astype(jnp.float32)
        h1 = jnp.maximum(xf @ w1.T + b1, 0.0)
        h2 = jnp.maximum(h1 @ w2.T + b2, 0.0)
        return h2 @ w3.T + b3

    # Pad only to a 128-lane multiple (a no-op for typical batch sizes); a ragged
    # final block_b tile is handled inside the kernel by masked boundary blocks,
    # so no full-array pad to block_b is ever needed.
    Bp = _round_up(B, 128)
    if Bp != B:
        pad = ((0, 0), (0, Bp - B)) if x_transposed else ((0, Bp - B), (0, 0))
        x = jnp.pad(x, pad)

    # Large tiles amortize the ~0.35us fixed per-grid-step cost, the dominant
    # term at S=16.  Default 8192 rows; sweepable via block_b.
    # TODO(synk): if the upstream producer can emit x as (S, B) for free, call
    # with x_transposed=True to get a lane-dense x tile (8x smaller VMEM
    # footprint, no per-step relayout) and grow block_b further.
    if block_b is None:
        block_b = 8192
    block_b = max(128, _round_up(block_b, 128))
    block_b = min(block_b, Bp)

    x_bytes = jnp.dtype(x.dtype).itemsize
    while (block_b > 128 and
           _vmem_need_bytes(block_b, S, H1, H2, x_bytes, x_transposed)
           > _VMEM_BUDGET_BYTES):
        block_b = max(128, _round_up(block_b // 2, 128))

    need = _vmem_need_bytes(block_b, S, H1, H2, x_bytes, x_transposed)
    vmem_limit = min(max(int(need * 1.5), 32 * 1024 * 1024), 56 * 1024 * 1024)

    out_row = _probe_pallas(
        x,                                            # streamed as-is, cast in-kernel
        w1.astype(jnp.bfloat16),
        b1.reshape(-1, 1).astype(jnp.float32),
        w2.astype(jnp.bfloat16),
        b2.reshape(-1, 1).astype(jnp.float32),
        w3.reshape(-1, 1).astype(jnp.float32),        # (1, H2) -> (H2, 1) column
        b3.reshape(1, 1).astype(jnp.float32),
        block_b=block_b,
        x_transposed=x_transposed,
        vmem_limit_bytes=vmem_limit,
    )
    return out_row.reshape(Bp, 1)[:B]


def init_params(key, num_sensors, hidden_units_1, hidden_units_2, dtype=jnp.float32):
    """Deterministic init mirroring nn.Linear's U(-1/sqrt(fan_in), 1/sqrt(fan_in)),
    stored in PyTorch layout: w [out, in], b [out]."""
    ks = jax.random.split(key, 6)

    def linear(kw, kb, fan_in, fan_out):
        bound = 1.0 / jnp.sqrt(fan_in)
        w = jax.random.uniform(kw, (fan_out, fan_in), dtype, -bound, bound)
        b = jax.random.uniform(kb, (fan_out,), dtype, -bound, bound)
        return w, b

    w1, b1 = linear(ks[0], ks[1], num_sensors, hidden_units_1)
    w2, b2 = linear(ks[2], ks[3], hidden_units_1, hidden_units_2)
    w3, b3 = linear(ks[4], ks[5], hidden_units_2, 1)
    return w1, b1, w2, b2, w3, b3


def reference_f32(x, w1, b1, w2, b2, w3, b3):
    """Full-f32 forward of the PyTorch module (HIGHEST-precision matmuls)."""
    hp = lax.Precision.HIGHEST
    h1 = jnp.maximum(jnp.dot(x, w1.T, precision=hp) + b1, 0.0)
    h2 = jnp.maximum(jnp.dot(h1, w2.T, precision=hp) + b2, 0.0)
    return jnp.dot(h2, w3.T, precision=hp) + b3


def reference_mixed(x, w1, b1, w2, b2, w3, b3):
    """Mirrors the kernel's precision recipe (bf16 MXU inputs, f32 accumulation).
    NOTE: the kernel intentionally runs the matmul inputs in bf16, so it will not
    match a strict-f32 PyTorch module at tight tolerances (see reference_f32)."""
    hp = lax.Precision.HIGHEST
    f32 = jnp.float32
    xr = x.astype(jnp.bfloat16).astype(f32)
    w1r = w1.astype(jnp.bfloat16).astype(f32)
    h1 = jnp.maximum(jnp.dot(xr, w1r.T, precision=hp) + b1, 0.0)
    h1r = h1.astype(jnp.bfloat16).astype(f32)
    w2r = w2.astype(jnp.bfloat16).astype(f32)
    h2 = jnp.maximum(jnp.dot(h1r, w2r.T, precision=hp) + b2, 0.0)
    return jnp.dot(h2, w3.T, precision=hp) + b3


if __name__ == "__main__":
    key = jax.random.PRNGKey(0)
    kx1, kx2, kp = jax.random.split(key, 3)

    num_sensors, h1_units, h2_units = 16, 32, 32
    params = init_params(kp, num_sensors, h1_units, h2_units)

    # 1) Tiny batch, forced through the Pallas path (default dispatch would send
    #    B=8 to the plain-XLA small-batch fallback).
    batch = 8
    x = jax.random.normal(kx1, (batch, num_sensors), jnp.float32)
    out = jax.block_until_ready(non_linear_probe(x, *params, use_pallas=True))
    assert out.shape == (batch, 1), out.shape
    assert jnp.allclose(out, reference_mixed(x, *params), atol=2e-3, rtol=2e-3)
    assert jnp.allclose(out, reference_f32(x, *params), atol=5e-2, rtol=5e-2)

    # 2) Larger 128-aligned batch through the default big-tile path.
    xb = jax.random.normal(kx2, (2048, num_sensors), jnp.float32)
    out2 = jax.block_until_ready(non_linear_probe(xb, *params, use_pallas=True))
    assert out2.shape == (2048, 1), out2.shape
    assert jnp.allclose(out2, reference_mixed(xb, *params), atol=2e-3, rtol=2e-3)

    # 3) Lane-dense producer layout (x already materialized as (S, B)).
    out3 = jax.block_until_ready(
        non_linear_probe(xb.T, *params, use_pallas=True, x_transposed=True,
                         block_b=512))
    assert out3.shape == (2048, 1), out3.shape
    assert jnp.allclose(out3, reference_mixed(xb, *params), atol=2e-3, rtol=2e-3)

    print("KERNEL_OK")
</pallas_src>

<mosaic_0001>
module attributes {stable_mosaic.version = 11 : i64} {
  func.func @_mlp_kernel(%arg0: i32, %arg1: memref<128x16xf32, #tpu.memory_space<vmem>>, %arg2: memref<32x16xbf16, #tpu.memory_space<vmem>>, %arg3: memref<32x1xf32, #tpu.memory_space<vmem>>, %arg4: memref<32x32xbf16, #tpu.memory_space<vmem>>, %arg5: memref<32x1xf32, #tpu.memory_space<vmem>>, %arg6: memref<32x1xf32, #tpu.memory_space<vmem>>, %arg7: memref<1x1xf32, #tpu.memory_space<vmem>>, %arg8: memref<1x128xf32, #tpu.memory_space<vmem>>) attributes {dimension_semantics = [#tpu.dimension_semantics<parallel>], iteration_bounds = array<i64: 1>, scalar_prefetch = 0 : i64, scratch_operands = 0 : i64, tpu.core_type = #tpu.core_type<tc>, window_params = [{transform_indices = @transform_0, window_bounds = array<i64: 128, 16>}, {pipeline_mode = #tpu.pipeline_mode<synchronous>, transform_indices = @transform_1, window_bounds = array<i64: 32, 16>}, {pipeline_mode = #tpu.pipeline_mode<synchronous>, transform_indices = @transform_2, window_bounds = array<i64: 32, 1>}, {pipeline_mode = #tpu.pipeline_mode<synchronous>, transform_indices = @transform_3, window_bounds = array<i64: 32, 32>}, {pipeline_mode = #tpu.pipeline_mode<synchronous>, transform_indices = @transform_4, window_bounds = array<i64: 32, 1>}, {pipeline_mode = #tpu.pipeline_mode<synchronous>, transform_indices = @transform_5, window_bounds = array<i64: 32, 1>}, {pipeline_mode = #tpu.pipeline_mode<synchronous>, transform_indices = @transform_6, window_bounds = array<i64: 1, 1>}, {transform_indices = @transform_7, window_bounds = array<i64: 1, 128>}]} {
    %c0 = arith.constant 0 : index
    %c0_0 = arith.constant 0 : index
    %0 = vector.load %arg1[%c0, %c0_0] : memref<128x16xf32, #tpu.memory_space<vmem>>, vector<128x16xf32>
    %1 = arith.truncf %0 : vector<128x16xf32> to vector<128x16xbf16>
    %c0_1 = arith.constant 0 : index
    %c0_2 = arith.constant 0 : index
    %2 = vector.load %arg2[%c0_1, %c0_2] : memref<32x16xbf16, #tpu.memory_space<vmem>>, vector<32x16xbf16>
    %cst = arith.constant dense<0.000000e+00> : vector<32x128xf32>
    %3 = tpu.matmul %2, %1, %cst {dimension_numbers = #tpu.dot_dimension_numbers<[1], [1], [0], [0], [0, 0, 1, 0], [], []>} : vector<32x16xbf16>, vector<128x16xbf16>, vector<32x128xf32> -> vector<32x128xf32>
    %c0_3 = arith.constant 0 : index
    %c0_4 = arith.constant 0 : index
    %4 = vector.load %arg3[%c0_3, %c0_4] : memref<32x1xf32, #tpu.memory_space<vmem>>, vector<32x1xf32>
    %5 = vector.broadcast %4 : vector<32x1xf32> to vector<32x128xf32>
    %6 = arith.addf %3, %5 : vector<32x128xf32>
    %cst_5 = arith.constant 0.000000e+00 : f32
    %7 = vector.broadcast %cst_5 : f32 to vector<32x128xf32>
    %8 = arith.maximumf %6, %7 : vector<32x128xf32>
    %c0_6 = arith.constant 0 : index
    %c0_7 = arith.constant 0 : index
    %9 = vector.load %arg4[%c0_6, %c0_7] : memref<32x32xbf16, #tpu.memory_space<vmem>>, vector<32x32xbf16>
    %10 = arith.truncf %8 : vector<32x128xf32> to vector<32x128xbf16>
    %cst_8 = arith.constant dense<0.000000e+00> : vector<32x128xf32>
    %11 = tpu.matmul %9, %10, %cst_8 {dimension_numbers = #tpu.dot_dimension_numbers<[1], [0], [0], [1], [0, 0, 1, 1], [], []>} : vector<32x32xbf16>, vector<32x128xbf16>, vector<32x128xf32> -> vector<32x128xf32>
    %c0_9 = arith.constant 0 : index
    %c0_10 = arith.constant 0 : index
    %12 = vector.load %arg5[%c0_9, %c0_10] : memref<32x1xf32, #tpu.memory_space<vmem>>, vector<32x1xf32>
    %13 = vector.broadcast %12 : vector<32x1xf32> to vector<32x128xf32>
    %14 = arith.addf %11, %13 : vector<32x128xf32>
    %cst_11 = arith.constant 0.000000e+00 : f32
    %15 = vector.broadcast %cst_11 : f32 to vector<32x128xf32>
    %16 = arith.maximumf %14, %15 : vector<32x128xf32>
    %c0_12 = arith.constant 0 : index
    %c0_13 = arith.constant 0 : index
    %17 = vector.load %arg6[%c0_12, %c0_13] : memref<32x1xf32, #tpu.memory_space<vmem>>, vector<32x1xf32>
    %18 = vector.broadcast %17 : vector<32x1xf32> to vector<32x128xf32>
    %19 = arith.mulf %16, %18 : vector<32x128xf32>
    %cst_14 = arith.constant dense<0.000000e+00> : vector<128xf32>
    %20 = vector.multi_reduction <add>, %19, %cst_14 [0] : vector<32x128xf32> to vector<128xf32>
    %21 = vector.shape_cast %20 : vector<128xf32> to vector<1x128xf32>
    %c0_15 = arith.constant 0 : index
    %c0_16 = arith.constant 0 : index
    %22 = vector.load %arg7[%c0_15, %c0_16] : memref<1x1xf32, #tpu.memory_space<vmem>>, vector<1x1xf32>
    %23 = vector.broadcast %22 : vector<1x1xf32> to vector<1x128xf32>
    %24 = arith.addf %21, %23 : vector<1x128xf32>
    %c0_17 = arith.constant 0 : index
    %c0_18 = arith.constant 0 : index
    %25 = vector.load %arg8[%c0_17, %c0_18] : memref<1x128xf32, #tpu.memory_space<vmem>>, vector<1x128xf32>
    tpu.vector_store %arg8[%c0_17, %c0_18], %24 {strides = array<i32>} : memref<1x128xf32, #tpu.memory_space<vmem>>, vector<1x128xf32>,
    return
  }
  func.func @transform_0(%arg0: i32) -> (i32, i32) {
    %c0_i32 = arith.constant 0 : i32
    %c0_i32_0 = arith.constant 0 : i32
    return %arg0, %c0_i32 : i32, i32
  }
  func.func @transform_1(%arg0: i32) -> (i32, i32) {
    %c0_i32 = arith.constant 0 : i32
    %c0_i32_0 = arith.constant 0 : i32
    %c0_i32_1 = arith.constant 0 : i32
    return %c0_i32, %c0_i32_0 : i32, i32
  }
  func.func @transform_2(%arg0: i32) -> (i32, i32) {
    %c0_i32 = arith.constant 0 : i32
    %c0_i32_0 = arith.constant 0 : i32
    %c0_i32_1 = arith.constant 0 : i32
    return %c0_i32, %c0_i32_0 : i32, i32
  }
  func.func @transform_3(%arg0: i32) -> (i32, i32) {
    %c0_i32 = arith.constant 0 : i32
    %c0_i32_0 = arith.constant 0 : i32
    %c0_i32_1 = arith.constant 0 : i32
    return %c0_i32, %c0_i32_0 : i32, i32
  }
  func.func @transform_4(%arg0: i32) -> (i32, i32) {
    %c0_i32 = arith.constant 0 : i32
    %c0_i32_0 = arith.constant 0 : i32
    %c0_i32_1 = arith.constant 0 : i32
    return %c0_i32, %c0_i32_0 : i32, i32
  }
  func.func @transform_5(%arg0: i32) -> (i32, i32) {
    %c0_i32 = arith.constant 0 : i32
    %c0_i32_0 = arith.constant 0 : i32
    %c0_i32_1 = arith.constant 0 : i32
    return %c0_i32, %c0_i32_0 : i32, i32
  }
  func.func @transform_6(%arg0: i32) -> (i32, i32) {
    %c0_i32 = arith.constant 0 : i32
    %c0_i32_0 = arith.constant 0 : i32
    %c0_i32_1 = arith.constant 0 : i32
    return %c0_i32, %c0_i32_0 : i32, i32
  }
  func.func @transform_7(%arg0: i32) -> (i32, i32) {
    %c0_i32 = arith.constant 0 : i32
    %c0_i32_0 = arith.constant 0 : i32
    return %c0_i32, %arg0 : i32, i32
  }
}

</mosaic_0001>

<llo_original>
// kernel: _probe_pallas.1
$region0: #{_probe_pallas.1}
  #allocation0 [shape = 'u32[]', space=smem, size = 0x4, offset = 0x4, fixed_abs, tag = 'smem constant byte address 0x4 - core index']
  #allocation1 [shape = 'u32[72,128]{1,0:T(1,128)}', space=vmem, size = 0x9000, scoped, tag = 'internal scratch']
  #allocation2 [shape = 'f32[1,1]{1,0:T(1,128)S(1)}', space=vmem, size = 0x200, scoped, tag = 'scoped memory for _probe_pallas.1']
  %s0 = inlined_call_operand.vmem [shape: f32[128,16], index: 0, kind: input, shape index: {}]
  %s1 = inlined_call_operand.vmem [shape: bf16[32,16], index: 1, kind: input, shape index: {}]
  %s2 = inlined_call_operand.vmem [shape: f32[32,1], index: 2, kind: input, shape index: {}]
  %s3 = inlined_call_operand.vmem [shape: bf16[32,32], index: 3, kind: input, shape index: {}]
  %s4 = inlined_call_operand.vmem [shape: f32[32,1], index: 4, kind: input, shape index: {}]
  %s5 = inlined_call_operand.vmem [shape: f32[32,1], index: 5, kind: input, shape index: {}]
  %s6 = inlined_call_operand.<no memory space> [shape: f32[1,1], index: 6, kind: input, shape index: {}]
  %s7 = inlined_call_operand.hbm [shape: f32[1,128], index: 7, kind: output, shape index: {}]
  %s8 = sld [smem:[#allocation0]]
  $region38: #{_probe_pallas.1} parent=0
    _
  %s10 = ssub.s32 1, %s8
  %s11 = scalar_select 0, %s10, %s8
  %v12 = vstv %s6
  %13 = vst [vmem:[#allocation2] sm:$0x1] %v12
  $region1: #{_probe_pallas.1} parent=0
    #allocation3 [shape = 'u8[512]{0}', space=vmem, size = 0x400, scoped, tag = 'output window, operand 0, single buffered']
    #allocation4 [shape = 's32[1]{0}', space=sflag, size = 0x4, scoped, tag = 'scoped memory for _probe_pallas.1']
    %14 = vsyncpa [#allocation4], 0
    // Predicated region
    $region2: #{_probe_pallas.1} parent=1 // pred_check
      _
    $region3: #{_probe_pallas.1} parent=1 // pred_check_branch
      %16 = sbr.rel (0) target = $region5
    $region4: #{_probe_pallas.1} parent=1 // pred_region
      _
    $region5: #{_probe_pallas.1} parent=1 // pred_fallthru
      _
    // Predicated region
    $region6: #{_probe_pallas.1} parent=1 // pred_check
      _
    $region7: #{_probe_pallas.1} parent=1 // pred_check_branch
      %18 = sbr.rel (0) target = $region9
    $region8: #{_probe_pallas.1} parent=1 // pred_region
      _
    $region9: #{_probe_pallas.1} parent=1 // pred_fallthru
      _
    // Predicated region
    $region10: #{_probe_pallas.1} parent=1 // pred_check
      _
    $region11: #{_probe_pallas.1} parent=1 // pred_check_branch
      %20 = sbr.rel (0) target = $region13
    $region12: #{_probe_pallas.1} parent=1 // pred_region
      _
    $region13: #{_probe_pallas.1} parent=1 // pred_fallthru
      _
    // Predicated region
    $region14: #{_probe_pallas.1} parent=1 // pred_check
      _
    $region15: #{_probe_pallas.1} parent=1 // pred_check_branch
      %22 = sbr.rel (0) target = $region17
    $region16: #{_probe_pallas.1} parent=1 // pred_region
      _
    $region17: #{_probe_pallas.1} parent=1 // pred_fallthru
      _
    // Predicated region
    $region18: #{_probe_pallas.1} parent=1 // pred_check
      _
    $region19: #{_probe_pallas.1} parent=1 // pred_check_branch
      %24 = sbr.rel (0) target = $region21
    $region20: #{_probe_pallas.1} parent=1 // pred_region
      _
    $region21: #{_probe_pallas.1} parent=1 // pred_fallthru
      _
    // Predicated region
    $region22: #{_probe_pallas.1} parent=1 // pred_check
      _
    $region23: #{_probe_pallas.1} parent=1 // pred_check_branch
      %26 = sbr.rel (0) target = $region25
    $region24: #{_probe_pallas.1} parent=1 // pred_region
      _
    $region25: #{_probe_pallas.1} parent=1 // pred_fallthru
      _
    // Predicated region
    $region26: #{_probe_pallas.1} parent=1 // pred_check
      _
    $region27: #{_probe_pallas.1} parent=1 // pred_check_branch
      %28 = sbr.rel (0) target = $region29
    $region28: #{_probe_pallas.1} parent=1 // pred_region
      _
    $region29: #{_probe_pallas.1} parent=1 // pred_fallthru
      _
    %v30 = vld [vmem:[%s0] sm:$0xff]
    %v31 = vld [vmem:[%s0 + $0x8] sm:$0xff]
    %v32 = vld [vmem:[%s0 + $0x10] sm:$0xff]
    %v33 = vld [vmem:[%s0 + $0x18] sm:$0xff]
    %v34 = vld [vmem:[%s0 + $0x20] sm:$0xff]
    %v35 = vld [vmem:[%s0 + $0x28] sm:$0xff]
    %v36 = vld [vmem:[%s0 + $0x30] sm:$0xff]
    %v37 = vld [vmem:[%s0 + $0x38] sm:$0xff]
    %v38 = vld [vmem:[%s0 + $0x40] sm:$0xff]
    %v39 = vld [vmem:[%s0 + $0x48] sm:$0xff]
    %v40 = vld [vmem:[%s0 + $0x50] sm:$0xff]
    %v41 = vld [vmem:[%s0 + $0x58] sm:$0xff]
    %v42 = vld [vmem:[%s0 + $0x60] sm:$0xff]
    %v43 = vld [vmem:[%s0 + $0x68] sm:$0xff]
    %v44 = vld [vmem:[%s0 + $0x70] sm:$0xff]
    %v45 = vld [vmem:[%s0 + $0x78] sm:$0xff]
    %v46 = vpack.c.bf16 %v31, %v30
    %v47 = vpack.c.bf16 %v33, %v32
    %v48 = vpack.c.bf16 %v35, %v34
    %v49 = vpack.c.bf16 %v37, %v36
    %v50 = vpack.c.bf16 %v39, %v38
    %v51 = vpack.c.bf16 %v41, %v40
    %v52 = vpack.c.bf16 %v43, %v42
    %v53 = vpack.c.bf16 %v45, %v44
    %v54 = vld [vmem:[%s1] sm:$0xf]
    %v55 = vld [vmem:[%s1 + $0x4] sm:$0xf]
    %v56 = vld [vmem:[%s1 + $0x8] sm:$0xf]
    %v57 = vld [vmem:[%s1 + $0xc] sm:$0xf]
    %v58 = vld [vmem:[%s2] sm:$0xff]
    %v59 = vld [vmem:[%s2 + $0x8] sm:$0xff]
    %v60 = vld [vmem:[%s2 + $0x10] sm:$0xff]
    %v61 = vld [vmem:[%s2 + $0x18] sm:$0xff]
    %63 = vset.pattern.permute.xlu0 0
    %64 = vperm.xlu0 %63, %v58
    %v65 = vpop.permute.xlu0 %64
    %68 = vset.pattern.permute.xlu0 0
    %69 = vperm.xlu0 %68, %v59
    %v70 = vpop.permute.xlu0 %69
    %73 = vset.pattern.permute.xlu0 0
    %74 = vperm.xlu0 %73, %v60
    %v75 = vpop.permute.xlu0 %74
    %78 = vset.pattern.permute.xlu0 0
    %79 = vperm.xlu0 %78, %v61
    %v80 = vpop.permute.xlu0 %79
    %v86 = vunpack.c.l.b16 %v54
    %v87 = vunpack.c.l.b16 %v55
    %v88 = vunpack.c.l.b16 %v56
    %v89 = vunpack.c.l.b16 %v57
    %v90 = vpack.c.b16 %v87, %v86
    %v91 = vpack.c.b16 %v89, %v88
    %vm92 = vcmask 130048
    %v94 = vsel %vm92, %v90, 0
    %v97 = vsel %vm92, %v91, 0
    %v100 = vsel %vm92, %v46, 0
    %v103 = vsel %vm92, %v47, 0
    %v106 = vsel %vm92, %v48, 0
    %v109 = vsel %vm92, %v49, 0
    %v112 = vsel %vm92, %v50, 0
    %v115 = vsel %vm92, %v51, 0
    %v118 = vsel %vm92, %v52, 0
    %v121 = vsel %vm92, %v53, 0
    %123 = vmatpush.bf16.xpose.msra.mxu0 %v121
    %124 = vmatpush.bf16.xpose.msra.mxu0 %v118
    %125 = vmatpush.bf16.xpose.msra.mxu0 %v115
    %126 = vmatpush.bf16.xpose.msra.mxu0 %v112
    %127 = vmatpush.bf16.xpose.msra.mxu0 %v109
    %128 = vmatpush.bf16.xpose.msra.mxu0 %v106
    %129 = vmatpush.bf16.xpose.msra.mxu0 %v103
    %130 = vmatpush.bf16.xpose.msra.mxu0 %v100
    %131 = vmatmul.bf16.gmra.mxu0 %v94
    %v132 = vpop.f32.mrf.mxu0
    %v133 = vadd.f32 %v65, %v132
    %v134 = vpop.f32.mrf.mxu0
    %v135 = vadd.f32 %v70, %v134
    %136 = vmatmul.bf16.gmra.mxu0 %v97
    %v137 = vpop.f32.mrf.mxu0
    %v138 = vadd.f32 %v75, %v137
    %v139 = vpop.f32.mrf.mxu0
    %v140 = vadd.f32 %v80, %v139
    %141 = vdwg.mxu0
    %v142 = vmax.f32 %v133, 0.0
    %v143 = vmax.f32 %v135, 0.0
    %v144 = vmax.f32 %v138, 0.0
    %v145 = vmax.f32 %v140, 0.0
    %v146 = vld [vmem:[%s3] sm:$0xf]
    %v147 = vld [vmem:[%s3 + $0x4] sm:$0xf]
    %v148 = vld [vmem:[%s3 + $0x8] sm:$0xf]
    %v149 = vld [vmem:[%s3 + $0xc] sm:$0xf]
    %v150 = vpack.c.bf16 %v143, %v142
    %v151 = vpack.c.bf16 %v145, %v144
    %v152 = vld [vmem:[%s4] sm:$0xff]
    %v153 = vld [vmem:[%s4 + $0x8] sm:$0xff]
    %v154 = vld [vmem:[%s4 + $0x10] sm:$0xff]
    %v155 = vld [vmem:[%s4 + $0x18] sm:$0xff]
    %157 = vset.pattern.permute.xlu0 0
    %158 = vperm.xlu0 %157, %v152
    %v159 = vpop.permute.xlu0 %158
    %162 = vset.pattern.permute.xlu0 0
    %163 = vperm.xlu0 %162, %v153
    %v164 = vpop.permute.xlu0 %163
    %167 = vset.pattern.permute.xlu0 0
    %168 = vperm.xlu0 %167, %v154
    %v169 = vpop.permute.xlu0 %168
    %172 = vset.pattern.permute.xlu0 0
    %173 = vperm.xlu0 %172, %v155
    %v174 = vpop.permute.xlu0 %173
    %v180 = vunpack.c.l.b16 %v146
    %v181 = vunpack.c.l.b16 %v147
    %v182 = vunpack.c.l.b16 %v148
    %v183 = vunpack.c.l.b16 %v149
    %v184 = vpack.c.b16 %v181, %v180
    %v185 = vpack.c.b16 %v183, %v182
    %vm186 = vcmask 261120
    %v188 = vsel %vm186, %v184, 0
    %v191 = vsel %vm186, %v185, 0
    %193 = vmatpush.bf16.msra.mxu0 0
    %194 = vmatpush.bf16.msra.mxu0 0
    %195 = vmatpush.bf16.msra.mxu0 0
    %196 = vmatpush.bf16.msra.mxu0 0
    %197 = vmatpush.bf16.msra.mxu0 0
    %198 = vmatpush.bf16.msra.mxu0 0
    %199 = vmatpush.bf16.msra.mxu0 %v151
    %200 = vmatpush.bf16.msra.mxu0 %v150
    %201 = vmatmul.bf16.gmra.mxu0 %v188
    %v202 = vpop.f32.mrf.mxu0
    %v203 = vadd.f32 %v159, %v202
    %v204 = vpop.f32.mrf.mxu0
    %v205 = vadd.f32 %v164, %v204
    %206 = vmatmul.bf16.gmra.mxu0 %v191
    %v207 = vpop.f32.mrf.mxu0
    %v208 = vadd.f32 %v169, %v207
    %v209 = vpop.f32.mrf.mxu0
    %v210 = vadd.f32 %v174, %v209
    %211 = vdwg.mxu0
    %v212 = vmax.f32 %v203, 0.0
    %v213 = vmax.f32 %v205, 0.0
    %v214 = vmax.f32 %v208, 0.0
    %v215 = vmax.f32 %v210, 0.0
    %v216 = vld [vmem:[%s5] sm:$0xff]
    %v217 = vld [vmem:[%s5 + $0x8] sm:$0xff]
    %v218 = vld [vmem:[%s5 + $0x10] sm:$0xff]
    %v219 = vld [vmem:[%s5 + $0x18] sm:$0xff]
    %221 = vset.pattern.permute.xlu0 0
    %222 = vperm.xlu0 %221, %v216
    %v223 = vpop.permute.xlu0 %222
    %226 = vset.pattern.permute.xlu0 0
    %227 = vperm.xlu0 %226, %v217
    %v228 = vpop.permute.xlu0 %227
    %231 = vset.pattern.permute.xlu0 0
    %232 = vperm.xlu0 %231, %v218
    %v233 = vpop.permute.xlu0 %232
    %236 = vset.pattern.permute.xlu0 0
    %237 = vperm.xlu0 %236, %v219
    %v238 = vpop.permute.xlu0 %237
    %v240 = vmul.f32 %v212, %v223
    %v241 = vmul.f32 %v213, %v228
    %v242 = vmul.f32 %v214, %v233
    %v243 = vmul.f32 %v215, %v238
    %v244 = vadd.f32 %v240, %v241
    %v245 = vadd.f32 %v244, %v242
    %v246 = vadd.f32 %v245, %v243
    %v247 = vrot.slane %v246, 4
    %v248 = vadd.f32 %v246, %v247
    %v249 = vrot.slane %v248, 2
    %v250 = vadd.f32 %v248, %v249
    %v251 = vrot.slane %v250, 1
    %v252 = vadd.f32 %v250, %v251
    %v253 = vld [vmem:[#allocation2] sm:$0x1]
    %255 = vset.pattern.permute.xlu0 0
    %256 = vperm.xlu0 %255, %v253
    %v257 = vpop.permute.xlu0 %256
    %v259 = vperm.slane %v257, 0
    %v260 = vadd.f32 %v252, %v259
    %261 = vst [vmem:[#allocation3] sm:$0x1] %v260
    // Predicated region
    $region30: #{_probe_pallas.1} parent=1 // pred_check
      _
    $region31: #{_probe_pallas.1} parent=1 // pred_check_branch
      %263 = sbr.rel (0) target = $region33
    $region32: #{_probe_pallas.1} parent=1 // pred_region
      %265 = vsyncadd [#allocation4], 0
      %s267 = sshll.u32 [#allocation3], 4
      %s268 = int_to_ptr.vmem [resolvable:$true] %s267
      %s269 = sshll.u32 %s7, 4
      %s270 = int_to_ptr.hbm [resolvable:$true] %s269
      %272 = dma.vmem_to_hbm [thread:$0]  %s268, 16, %s270, [#allocation4]
    $region33: #{_probe_pallas.1} parent=1 // pred_fallthru
      _
    // Predicated region
    $region34: #{_probe_pallas.1} parent=1 // pred_check
      _
    $region35: #{_probe_pallas.1} parent=1 // pred_check_branch
      %274 = sbr.rel (0) target = $region37
    $region36: #{_probe_pallas.1} parent=1 // pred_region
      %276 = dma.done [#allocation4], 16
    $region37: #{_probe_pallas.1} parent=1 // pred_fallthru
      _
    %277 = vsyncpa [#allocation4], 1

</llo_original>
